<compile_context>
chip_gen: v6e
topology: v6e:2x2x1
jax: 0.10.0
libtpu: 0.0.40
codegen_flags: <defaults>
</compile_context>

<pallas_src>
import jax
import jax.numpy as jnp
from jax import lax
from jax.experimental import pallas as pl
from jax.experimental.pallas import tpu as pltpu


def _embed_kernel(ids_ref, emb_hbm, pos_ref, out_ref, rows_vmem, sems):
    # ids_ref  : (B*S,) int32 in SMEM (scalar prefetch) -- addressing data
    # emb_hbm  : (V, D) f32, raw HBM ref (memory_space=pl.ANY)
    # pos_ref  : (TILE_S, D) f32 positional rows for this seq tile (VMEM, reused across batch)
    # out_ref  : (TILE_S, D) f32 output tile (leading batch dim squeezed)
    # rows_vmem: (2, TILE_S, D) f32 double-buffered scratch for gathered embedding rows
    # sems     : (2,) DMA semaphores, one per buffer slot
    s = pl.program_id(0)             # seq-tile index (outer, "parallel")
    b = pl.program_id(1)             # batch index   (inner, "arbitrary")
    n_b = pl.num_programs(1)
    tile_s = rows_vmem.shape[1]
    seq_len = pl.num_programs(0) * tile_s

    slot = b & 1                     # slot consumed by the current step
    nxt_slot = 1 - slot              # slot the next batch step will consume

    def issue_gather(batch_idx, dst_slot):
        # Issue TILE_S small row DMAs (HBM -> VMEM) for tokens (batch_idx, s*tile_s : +tile_s).
        base = batch_idx * seq_len + s * tile_s

        def issue_one(t):
            tok = ids_ref[base + t]
            pltpu.make_async_copy(
                emb_hbm.at[pl.ds(tok, 1), :],
                rows_vmem.at[dst_slot, pl.ds(t, 1), :],
                sems.at[dst_slot],
            ).start()

        if tile_s <= 16:
            for t in range(tile_s):                      # small static unroll
                issue_one(t)
        else:                                            # bound scalar code size for big tiles
            lax.fori_loop(0, tile_s,
                          lambda t, carry: (issue_one(t), carry)[1],
                          0, unroll=8)

    # First batch row of this seq tile: nothing was prefetched for us -- gather now.
    @pl.when(b == 0)
    def _():
        issue_gather(0, 0)

    # Prefetch the NEXT batch row's gather into the other slot before waiting on the current
    # slot (its ids are already in SMEM).  Restricted to the inner batch axis so a megacore
    # shard boundary on the outer seq axis can never leave a DMA un-waited.
    @pl.when(b + 1 < n_b)
    def _():
        issue_gather(b + 1, nxt_slot)

    # Single aggregate wait: all row DMAs for this slot signal sems[slot]; a descriptor
    # covering the whole (tile_s, D) slot waits for the same total byte count.
    pltpu.make_async_copy(rows_vmem.at[slot], rows_vmem.at[slot], sems.at[slot]).wait()

    # token embedding + positional encoding; dropout(p=0.0) is identity.
    # TODO(synk): nonzero dropout would need pltpu.prng_seed / pltpu.prng_random_bits here.
    out_ref[...] = rows_vmem[slot] + pos_ref[...]


def _pick_seq_tile(S, D, itemsize, vmem_budget_bytes=16 << 20):
    """Largest seq tile dividing S whose VMEM working set stays under budget.

    Working set ~= 2x gathered rows (double buffer) + 2x pos + 2x out (pipeline buffers)
    ~= 7 blocks of tile_s*D*itemsize; keeping it <= ~16 MiB is safe on v5e/v6e/v7x.
    """
    max_tile = max(8, vmem_budget_bytes // (7 * D * itemsize))
    for cand in (512, 256, 128, 64, 32, 16, 8):
        if cand <= max_tile and S % cand == 0:
            return cand
    return S  # small / irregular S: one tile spans the whole sequence


def transformer_embedding(ids, emb_table, pos_encoding, *, tile_s=None):
    """ids: (B, S) int, emb_table: (V, D) f32, pos_encoding: (max_len, D) f32 -> (B, S, D)."""
    B, S = ids.shape
    V, D = emb_table.shape
    pos_slice = pos_encoding[:S, :]          # matches PyTorch `encoding[:seq_len, :]`

    if tile_s is None:
        tile_s = _pick_seq_tile(S, D, jnp.dtype(emb_table.dtype).itemsize)
    assert S % tile_s == 0
    n_s = S // tile_s

    # 1-D ids keep SMEM padding at next_pow2(4*B*S) bytes instead of the 2-D
    # [ceil(B/8)*8, ceil(S/128)*128]-word blow-up.
    ids_flat = ids.reshape(-1).astype(jnp.int32)

    grid_spec = pltpu.PrefetchScalarGridSpec(
        num_scalar_prefetch=1,                       # ids -> SMEM
        grid=(n_s, B),                               # seq tiles outer, batch inner
        in_specs=[
            pl.BlockSpec(memory_space=pl.ANY),       # embedding table stays in HBM
            # pos tile: block index constant across the inner batch axis -> fetched once per s
            pl.BlockSpec((tile_s, D), lambda s, b, ids: (s, 0)),
        ],
        out_specs=pl.BlockSpec((pl.Squeezed(), tile_s, D),
                               lambda s, b, ids: (b, s, 0)),
        scratch_shapes=[
            pltpu.VMEM((2, tile_s, D), emb_table.dtype),   # double-buffered gathered rows
            pltpu.SemaphoreType.DMA((2,)),                 # one shared sem per slot
        ],
    )

    return pl.pallas_call(
        _embed_kernel,
        out_shape=jax.ShapeDtypeStruct((B, S, D), emb_table.dtype),
        grid_spec=grid_spec,
        compiler_params=pltpu.CompilerParams(
            # Outer seq axis is megacore-shardable (helps v7x 2-TC chips); the inner batch
            # axis carries the prefetch chain, so it must stay "arbitrary".
            dimension_semantics=("parallel", "arbitrary"),
            vmem_limit_bytes=32 << 20,
        ),
    )(ids_flat, emb_table, pos_slice)


def make_positional_encoding(d_model, max_len):
    """Matches the PyTorch PositionalEncoding buffer construction (assumes even d_model)."""
    pos = jnp.arange(0, max_len, dtype=jnp.float32)[:, None]      # (max_len, 1)
    _2i = jnp.arange(0, d_model, 2, dtype=jnp.float32)            # (d_model/2,)
    div = jnp.power(10000.0, _2i / d_model)                       # (d_model/2,)
    enc = jnp.zeros((max_len, d_model), dtype=jnp.float32)
    enc = enc.at[:, 0::2].set(jnp.sin(pos / div))
    enc = enc.at[:, 1::2].set(jnp.cos(pos / div))
    return enc


if __name__ == "__main__":
    # small, deterministic setup; D chosen lane-dense (multiple of 128)
    vocab_size, d_model, max_len = 512, 128, 64
    B, S = 2, 8

    key = jax.random.PRNGKey(0)
    k_ids, k_emb = jax.random.split(key)

    ids = jax.random.randint(k_ids, (B, S), 0, vocab_size, dtype=jnp.int32)
    # nn.Embedding default init: N(0, 1)
    emb_table = jax.random.normal(k_emb, (vocab_size, d_model), dtype=jnp.float32)
    pos_encoding = make_positional_encoding(d_model, max_len)

    # TODO(synk): a bf16 embedding table would halve gather bytes for large D; kept f32 to
    # match nn.Embedding exactly (and avoid the v5e bf16-VPU caveat).
    out = transformer_embedding(ids, emb_table, pos_encoding)
    out = jax.block_until_ready(out)

    # pure-JAX reference check
    ref = emb_table[ids] + pos_encoding[:S, :][None, :, :]
    assert out.shape == (B, S, d_model)
    assert jnp.allclose(out, ref, atol=1e-5, rtol=1e-5)

    print("KERNEL_OK")
</pallas_src>

<mosaic_0001>
module attributes {stable_mosaic.version = 11 : i64} {
  func.func @_embed_kernel(%arg0: i32, %arg1: i32, %arg2: memref<16xi32, #tpu.memory_space<smem>>, %arg3: memref<512x128xf32, #tpu.memory_space<any>>, %arg4: memref<8x128xf32, #tpu.memory_space<vmem>>, %arg5: memref<1x8x128xf32, #tpu.memory_space<vmem>>, %arg6: memref<2x8x128xf32, #tpu.memory_space<vmem>>, %arg7: memref<2x!tpu.dma_semaphore, #tpu.memory_space<semaphore_mem>>) attributes {dimension_semantics = [#tpu.dimension_semantics<parallel>, #tpu.dimension_semantics<arbitrary>], iteration_bounds = array<i64: 1, 2>, scalar_prefetch = 1 : i64, scratch_operands = 2 : i64, tpu.core_type = #tpu.core_type<tc>, window_params = [{}, {transform_indices = @transform_1, window_bounds = array<i64: 8, 128>}, {transform_indices = @transform_2, window_bounds = array<i64: 1, 8, 128>}]} {
    %c1_i32 = arith.constant 1 : i32
    %0 = arith.andi %arg1, %c1_i32 : i32
    %c1_i32_0 = arith.constant 1 : i32
    %1 = arith.subi %c1_i32_0, %0 : i32
    %c0_i32 = arith.constant 0 : i32
    %2 = arith.cmpi eq, %arg1, %c0_i32 : i32
    %3 = arith.extui %2 : i1 to i32
    %c0_i32_1 = arith.constant 0 : i32
    %4 = arith.cmpi ne, %3, %c0_i32_1 : i32
    scf.if %4 {
      %c8_i32 = arith.constant 8 : i32
      %23 = arith.muli %arg0, %c8_i32 : i32
      %c0_i32_14 = arith.constant 0 : i32
      %24 = arith.addi %c0_i32_14, %23 : i32
      %c0_i32_15 = arith.constant 0 : i32
      %25 = arith.addi %24, %c0_i32_15 : i32
      %26 = arith.index_cast %25 : i32 to index
      %27 = memref.load %arg2[%26] : memref<16xi32, #tpu.memory_space<smem>>
      %c0_i32_16 = arith.constant 0 : i32
      %c0_i32_17 = arith.constant 0 : i32
      %c0_i32_18 = arith.constant 0 : i32
      %28 = tpu.memref_slice %arg3[%27, %c0_i32_18] : memref<512x128xf32, #tpu.memory_space<any>> -> memref<1x128xf32, #tpu.memory_space<any>>
      %c0_i32_19 = arith.constant 0 : i32
      %c0_i32_20 = arith.constant 0 : i32
      %29 = tpu.memref_slice %arg6[%c0_i32_16, %c0_i32_19, %c0_i32_20] : memref<2x8x128xf32, #tpu.memory_space<vmem>> -> memref<1x1x128xf32, #tpu.memory_space<vmem>>
      %30 = tpu.memref_squeeze %29 : memref<1x1x128xf32, #tpu.memory_space<vmem>> -> memref<1x128xf32, #tpu.memory_space<vmem>>
      %31 = tpu.memref_slice %arg7[%c0_i32_17] : memref<2x!tpu.dma_semaphore, #tpu.memory_space<semaphore_mem>> -> memref<1x!tpu.dma_semaphore, #tpu.memory_space<semaphore_mem>>
      %32 = tpu.memref_squeeze %31 : memref<1x!tpu.dma_semaphore, #tpu.memory_space<semaphore_mem>> -> memref<!tpu.dma_semaphore, #tpu.memory_space<semaphore_mem>>
      tpu.enqueue_dma source(%28 : memref<1x128xf32, #tpu.memory_space<any>>) target(%30 : memref<1x128xf32, #tpu.memory_space<vmem>>) target_semaphore(%32 : memref<!tpu.dma_semaphore, #tpu.memory_space<semaphore_mem>>)
      %c1_i32_21 = arith.constant 1 : i32
      %33 = arith.addi %24, %c1_i32_21 : i32
      %34 = arith.index_cast %33 : i32 to index
      %35 = memref.load %arg2[%34] : memref<16xi32, #tpu.memory_space<smem>>
      %c0_i32_22 = arith.constant 0 : i32
      %c0_i32_23 = arith.constant 0 : i32
      %c0_i32_24 = arith.constant 0 : i32
      %36 = tpu.memref_slice %arg3[%35, %c0_i32_24] : memref<512x128xf32, #tpu.memory_space<any>> -> memref<1x128xf32, #tpu.memory_space<any>>
      %c1_i32_25 = arith.constant 1 : i32
      %c0_i32_26 = arith.constant 0 : i32
      %37 = tpu.memref_slice %arg6[%c0_i32_22, %c1_i32_25, %c0_i32_26] : memref<2x8x128xf32, #tpu.memory_space<vmem>> -> memref<1x1x128xf32, #tpu.memory_space<vmem>>
      %38 = tpu.memref_squeeze %37 : memref<1x1x128xf32, #tpu.memory_space<vmem>> -> memref<1x128xf32, #tpu.memory_space<vmem>>
      %39 = tpu.memref_slice %arg7[%c0_i32_23] : memref<2x!tpu.dma_semaphore, #tpu.memory_space<semaphore_mem>> -> memref<1x!tpu.dma_semaphore, #tpu.memory_space<semaphore_mem>>
      %40 = tpu.memref_squeeze %39 : memref<1x!tpu.dma_semaphore, #tpu.memory_space<semaphore_mem>> -> memref<!tpu.dma_semaphore, #tpu.memory_space<semaphore_mem>>
      tpu.enqueue_dma source(%36 : memref<1x128xf32, #tpu.memory_space<any>>) target(%38 : memref<1x128xf32, #tpu.memory_space<vmem>>) target_semaphore(%40 : memref<!tpu.dma_semaphore, #tpu.memory_space<semaphore_mem>>)
      %c2_i32_27 = arith.constant 2 : i32
      %41 = arith.addi %24, %c2_i32_27 : i32
      %42 = arith.index_cast %41 : i32 to index
      %43 = memref.load %arg2[%42] : memref<16xi32, #tpu.memory_space<smem>>
      %c0_i32_28 = arith.constant 0 : i32
      %c0_i32_29 = arith.constant 0 : i32
      %c0_i32_30 = arith.constant 0 : i32
      %44 = tpu.memref_slice %arg3[%43, %c0_i32_30] : memref<512x128xf32, #tpu.memory_space<any>> -> memref<1x128xf32, #tpu.memory_space<any>>
      %c2_i32_31 = arith.constant 2 : i32
      %c0_i32_32 = arith.constant 0 : i32
      %45 = tpu.memref_slice %arg6[%c0_i32_28, %c2_i32_31, %c0_i32_32] : memref<2x8x128xf32, #tpu.memory_space<vmem>> -> memref<1x1x128xf32, #tpu.memory_space<vmem>>
      %46 = tpu.memref_squeeze %45 : memref<1x1x128xf32, #tpu.memory_space<vmem>> -> memref<1x128xf32, #tpu.memory_space<vmem>>
      %47 = tpu.memref_slice %arg7[%c0_i32_29] : memref<2x!tpu.dma_semaphore, #tpu.memory_space<semaphore_mem>> -> memref<1x!tpu.dma_semaphore, #tpu.memory_space<semaphore_mem>>
      %48 = tpu.memref_squeeze %47 : memref<1x!tpu.dma_semaphore, #tpu.memory_space<semaphore_mem>> -> memref<!tpu.dma_semaphore, #tpu.memory_space<semaphore_mem>>
      tpu.enqueue_dma source(%44 : memref<1x128xf32, #tpu.memory_space<any>>) target(%46 : memref<1x128xf32, #tpu.memory_space<vmem>>) target_semaphore(%48 : memref<!tpu.dma_semaphore, #tpu.memory_space<semaphore_mem>>)
      %c3_i32 = arith.constant 3 : i32
      %49 = arith.addi %24, %c3_i32 : i32
      %50 = arith.index_cast %49 : i32 to index
      %51 = memref.load %arg2[%50] : memref<16xi32, #tpu.memory_space<smem>>
      %c0_i32_33 = arith.constant 0 : i32
      %c0_i32_34 = arith.constant 0 : i32
      %c0_i32_35 = arith.constant 0 : i32
      %52 = tpu.memref_slice %arg3[%51, %c0_i32_35] : memref<512x128xf32, #tpu.memory_space<any>> -> memref<1x128xf32, #tpu.memory_space<any>>
      %c3_i32_36 = arith.constant 3 : i32
      %c0_i32_37 = arith.constant 0 : i32
      %53 = tpu.memref_slice %arg6[%c0_i32_33, %c3_i32_36, %c0_i32_37] : memref<2x8x128xf32, #tpu.memory_space<vmem>> -> memref<1x1x128xf32, #tpu.memory_space<vmem>>
      %54 = tpu.memref_squeeze %53 : memref<1x1x128xf32, #tpu.memory_space<vmem>> -> memref<1x128xf32, #tpu.memory_space<vmem>>
      %55 = tpu.memref_slice %arg7[%c0_i32_34] : memref<2x!tpu.dma_semaphore, #tpu.memory_space<semaphore_mem>> -> memref<1x!tpu.dma_semaphore, #tpu.memory_space<semaphore_mem>>
      %56 = tpu.memref_squeeze %55 : memref<1x!tpu.dma_semaphore, #tpu.memory_space<semaphore_mem>> -> memref<!tpu.dma_semaphore, #tpu.memory_space<semaphore_mem>>
      tpu.enqueue_dma source(%52 : memref<1x128xf32, #tpu.memory_space<any>>) target(%54 : memref<1x128xf32, #tpu.memory_space<vmem>>) target_semaphore(%56 : memref<!tpu.dma_semaphore, #tpu.memory_space<semaphore_mem>>)
      %c4_i32 = arith.constant 4 : i32
      %57 = arith.addi %24, %c4_i32 : i32
      %58 = arith.index_cast %57 : i32 to index
      %59 = memref.load %arg2[%58] : memref<16xi32, #tpu.memory_space<smem>>
      %c0_i32_38 = arith.constant 0 : i32
      %c0_i32_39 = arith.constant 0 : i32
      %c0_i32_40 = arith.constant 0 : i32
      %60 = tpu.memref_slice %arg3[%59, %c0_i32_40] : memref<512x128xf32, #tpu.memory_space<any>> -> memref<1x128xf32, #tpu.memory_space<any>>
      %c4_i32_41 = arith.constant 4 : i32
      %c0_i32_42 = arith.constant 0 : i32
      %61 = tpu.memref_slice %arg6[%c0_i32_38, %c4_i32_41, %c0_i32_42] : memref<2x8x128xf32, #tpu.memory_space<vmem>> -> memref<1x1x128xf32, #tpu.memory_space<vmem>>
      %62 = tpu.memref_squeeze %61 : memref<1x1x128xf32, #tpu.memory_space<vmem>> -> memref<1x128xf32, #tpu.memory_space<vmem>>
      %63 = tpu.memref_slice %arg7[%c0_i32_39] : memref<2x!tpu.dma_semaphore, #tpu.memory_space<semaphore_mem>> -> memref<1x!tpu.dma_semaphore, #tpu.memory_space<semaphore_mem>>
      %64 = tpu.memref_squeeze %63 : memref<1x!tpu.dma_semaphore, #tpu.memory_space<semaphore_mem>> -> memref<!tpu.dma_semaphore, #tpu.memory_space<semaphore_mem>>
      tpu.enqueue_dma source(%60 : memref<1x128xf32, #tpu.memory_space<any>>) target(%62 : memref<1x128xf32, #tpu.memory_space<vmem>>) target_semaphore(%64 : memref<!tpu.dma_semaphore, #tpu.memory_space<semaphore_mem>>)
      %c5_i32 = arith.constant 5 : i32
      %65 = arith.addi %24, %c5_i32 : i32
      %66 = arith.index_cast %65 : i32 to index
      %67 = memref.load %arg2[%66] : memref<16xi32, #tpu.memory_space<smem>>
      %c0_i32_43 = arith.constant 0 : i32
      %c0_i32_44 = arith.constant 0 : i32
      %c0_i32_45 = arith.constant 0 : i32
      %68 = tpu.memref_slice %arg3[%67, %c0_i32_45] : memref<512x128xf32, #tpu.memory_space<any>> -> memref<1x128xf32, #tpu.memory_space<any>>
      %c5_i32_46 = arith.constant 5 : i32
      %c0_i32_47 = arith.constant 0 : i32
      %69 = tpu.memref_slice %arg6[%c0_i32_43, %c5_i32_46, %c0_i32_47] : memref<2x8x128xf32, #tpu.memory_space<vmem>> -> memref<1x1x128xf32, #tpu.memory_space<vmem>>
      %70 = tpu.memref_squeeze %69 : memref<1x1x128xf32, #tpu.memory_space<vmem>> -> memref<1x128xf32, #tpu.memory_space<vmem>>
      %71 = tpu.memref_slice %arg7[%c0_i32_44] : memref<2x!tpu.dma_semaphore, #tpu.memory_space<semaphore_mem>> -> memref<1x!tpu.dma_semaphore, #tpu.memory_space<semaphore_mem>>
      %72 = tpu.memref_squeeze %71 : memref<1x!tpu.dma_semaphore, #tpu.memory_space<semaphore_mem>> -> memref<!tpu.dma_semaphore, #tpu.memory_space<semaphore_mem>>
      tpu.enqueue_dma source(%68 : memref<1x128xf32, #tpu.memory_space<any>>) target(%70 : memref<1x128xf32, #tpu.memory_space<vmem>>) target_semaphore(%72 : memref<!tpu.dma_semaphore, #tpu.memory_space<semaphore_mem>>)
      %c6_i32 = arith.constant 6 : i32
      %73 = arith.addi %24, %c6_i32 : i32
      %74 = arith.index_cast %73 : i32 to index
      %75 = memref.load %arg2[%74] : memref<16xi32, #tpu.memory_space<smem>>
      %c0_i32_48 = arith.constant 0 : i32
      %c0_i32_49 = arith.constant 0 : i32
      %c0_i32_50 = arith.constant 0 : i32
      %76 = tpu.memref_slice %arg3[%75, %c0_i32_50] : memref<512x128xf32, #tpu.memory_space<any>> -> memref<1x128xf32, #tpu.memory_space<any>>
      %c6_i32_51 = arith.constant 6 : i32
      %c0_i32_52 = arith.constant 0 : i32
      %77 = tpu.memref_slice %arg6[%c0_i32_48, %c6_i32_51, %c0_i32_52] : memref<2x8x128xf32, #tpu.memory_space<vmem>> -> memref<1x1x128xf32, #tpu.memory_space<vmem>>
      %78 = tpu.memref_squeeze %77 : memref<1x1x128xf32, #tpu.memory_space<vmem>> -> memref<1x128xf32, #tpu.memory_space<vmem>>
      %79 = tpu.memref_slice %arg7[%c0_i32_49] : memref<2x!tpu.dma_semaphore, #tpu.memory_space<semaphore_mem>> -> memref<1x!tpu.dma_semaphore, #tpu.memory_space<semaphore_mem>>
      %80 = tpu.memref_squeeze %79 : memref<1x!tpu.dma_semaphore, #tpu.memory_space<semaphore_mem>> -> memref<!tpu.dma_semaphore, #tpu.memory_space<semaphore_mem>>
      tpu.enqueue_dma source(%76 : memref<1x128xf32, #tpu.memory_space<any>>) target(%78 : memref<1x128xf32, #tpu.memory_space<vmem>>) target_semaphore(%80 : memref<!tpu.dma_semaphore, #tpu.memory_space<semaphore_mem>>)
      %c7_i32 = arith.constant 7 : i32
      %81 = arith.addi %24, %c7_i32 : i32
      %82 = arith.index_cast %81 : i32 to index
      %83 = memref.load %arg2[%82] : memref<16xi32, #tpu.memory_space<smem>>
      %c0_i32_53 = arith.constant 0 : i32
      %c0_i32_54 = arith.constant 0 : i32
      %c0_i32_55 = arith.constant 0 : i32
      %84 = tpu.memref_slice %arg3[%83, %c0_i32_55] : memref<512x128xf32, #tpu.memory_space<any>> -> memref<1x128xf32, #tpu.memory_space<any>>
      %c7_i32_56 = arith.constant 7 : i32
      %c0_i32_57 = arith.constant 0 : i32
      %85 = tpu.memref_slice %arg6[%c0_i32_53, %c7_i32_56, %c0_i32_57] : memref<2x8x128xf32, #tpu.memory_space<vmem>> -> memref<1x1x128xf32, #tpu.memory_space<vmem>>
      %86 = tpu.memref_squeeze %85 : memref<1x1x128xf32, #tpu.memory_space<vmem>> -> memref<1x128xf32, #tpu.memory_space<vmem>>
      %87 = tpu.memref_slice %arg7[%c0_i32_54] : memref<2x!tpu.dma_semaphore, #tpu.memory_space<semaphore_mem>> -> memref<1x!tpu.dma_semaphore, #tpu.memory_space<semaphore_mem>>
      %88 = tpu.memref_squeeze %87 : memref<1x!tpu.dma_semaphore, #tpu.memory_space<semaphore_mem>> -> memref<!tpu.dma_semaphore, #tpu.memory_space<semaphore_mem>>
      tpu.enqueue_dma source(%84 : memref<1x128xf32, #tpu.memory_space<any>>) target(%86 : memref<1x128xf32, #tpu.memory_space<vmem>>) target_semaphore(%88 : memref<!tpu.dma_semaphore, #tpu.memory_space<semaphore_mem>>)
    } else {
    }
    %c1_i32_2 = arith.constant 1 : i32
    %5 = arith.addi %arg1, %c1_i32_2 : i32
    %c2_i32 = arith.constant 2 : i32
    %6 = arith.cmpi slt, %5, %c2_i32 : i32
    %7 = arith.extui %6 : i1 to i32
    %c0_i32_3 = arith.constant 0 : i32
    %8 = arith.cmpi ne, %7, %c0_i32_3 : i32
    scf.if %8 {
      %c1_i32_14 = arith.constant 1 : i32
      %23 = arith.addi %arg1, %c1_i32_14 : i32
      %c8_i32 = arith.constant 8 : i32
      %24 = arith.muli %23, %c8_i32 : i32
      %c8_i32_15 = arith.constant 8 : i32
      %25 = arith.muli %arg0, %c8_i32_15 : i32
      %26 = arith.addi %24, %25 : i32
      %c0_i32_16 = arith.constant 0 : i32
      %27 = arith.addi %26, %c0_i32_16 : i32
      %28 = arith.index_cast %27 : i32 to index
      %29 = memref.load %arg2[%28] : memref<16xi32, #tpu.memory_space<smem>>
      %c0_i32_17 = arith.constant 0 : i32
      %30 = tpu.memref_slice %arg3[%29, %c0_i32_17] : memref<512x128xf32, #tpu.memory_space<any>> -> memref<1x128xf32, #tpu.memory_space<any>>
      %c0_i32_18 = arith.constant 0 : i32
      %c0_i32_19 = arith.constant 0 : i32
      %31 = tpu.memref_slice %arg6[%1, %c0_i32_18, %c0_i32_19] : memref<2x8x128xf32, #tpu.memory_space<vmem>> -> memref<1x1x128xf32, #tpu.memory_space<vmem>>
      %32 = tpu.memref_squeeze %31 : memref<1x1x128xf32, #tpu.memory_space<vmem>> -> memref<1x128xf32, #tpu.memory_space<vmem>>
      %33 = tpu.memref_slice %arg7[%1] : memref<2x!tpu.dma_semaphore, #tpu.memory_space<semaphore_mem>> -> memref<1x!tpu.dma_semaphore, #tpu.memory_space<semaphore_mem>>
      %34 = tpu.memref_squeeze %33 : memref<1x!tpu.dma_semaphore, #tpu.memory_space<semaphore_mem>> -> memref<!tpu.dma_semaphore, #tpu.memory_space<semaphore_mem>>
      tpu.enqueue_dma source(%30 : memref<1x128xf32, #tpu.memory_space<any>>) target(%32 : memref<1x128xf32, #tpu.memory_space<vmem>>) target_semaphore(%34 : memref<!tpu.dma_semaphore, #tpu.memory_space<semaphore_mem>>)
      %c1_i32_20 = arith.constant 1 : i32
      %35 = arith.addi %26, %c1_i32_20 : i32
      %36 = arith.index_cast %35 : i32 to index
      %37 = memref.load %arg2[%36] : memref<16xi32, #tpu.memory_space<smem>>
      %c0_i32_21 = arith.constant 0 : i32
      %38 = tpu.memref_slice %arg3[%37, %c0_i32_21] : memref<512x128xf32, #tpu.memory_space<any>> -> memref<1x128xf32, #tpu.memory_space<any>>
      %c1_i32_22 = arith.constant 1 : i32
      %c0_i32_23 = arith.constant 0 : i32
      %39 = tpu.memref_slice %arg6[%1, %c1_i32_22, %c0_i32_23] : memref<2x8x128xf32, #tpu.memory_space<vmem>> -> memref<1x1x128xf32, #tpu.memory_space<vmem>>
      %40 = tpu.memref_squeeze %39 : memref<1x1x128xf32, #tpu.memory_space<vmem>> -> memref<1x128xf32, #tpu.memory_space<vmem>>
      %41 = tpu.memref_slice %arg7[%1] : memref<2x!tpu.dma_semaphore, #tpu.memory_space<semaphore_mem>> -> memref<1x!tpu.dma_semaphore, #tpu.memory_space<semaphore_mem>>
      %42 = tpu.memref_squeeze %41 : memref<1x!tpu.dma_semaphore, #tpu.memory_space<semaphore_mem>> -> memref<!tpu.dma_semaphore, #tpu.memory_space<semaphore_mem>>
      tpu.enqueue_dma source(%38 : memref<1x128xf32, #tpu.memory_space<any>>) target(%40 : memref<1x128xf32, #tpu.memory_space<vmem>>) target_semaphore(%42 : memref<!tpu.dma_semaphore, #tpu.memory_space<semaphore_mem>>)
      %c2_i32_24 = arith.constant 2 : i32
      %43 = arith.addi %26, %c2_i32_24 : i32
      %44 = arith.index_cast %43 : i32 to index
      %45 = memref.load %arg2[%44] : memref<16xi32, #tpu.memory_space<smem>>
      %c0_i32_25 = arith.constant 0 : i32
      %46 = tpu.memref_slice %arg3[%45, %c0_i32_25] : memref<512x128xf32, #tpu.memory_space<any>> -> memref<1x128xf32, #tpu.memory_space<any>>
      %c2_i32_26 = arith.constant 2 : i32
      %c0_i32_27 = arith.constant 0 : i32
      %47 = tpu.memref_slice %arg6[%1, %c2_i32_26, %c0_i32_27] : memref<2x8x128xf32, #tpu.memory_space<vmem>> -> memref<1x1x128xf32, #tpu.memory_space<vmem>>
      %48 = tpu.memref_squeeze %47 : memref<1x1x128xf32, #tpu.memory_space<vmem>> -> memref<1x128xf32, #tpu.memory_space<vmem>>
      %49 = tpu.memref_slice %arg7[%1] : memref<2x!tpu.dma_semaphore, #tpu.memory_space<semaphore_mem>> -> memref<1x!tpu.dma_semaphore, #tpu.memory_space<semaphore_mem>>
      %50 = tpu.memref_squeeze %49 : memref<1x!tpu.dma_semaphore, #tpu.memory_space<semaphore_mem>> -> memref<!tpu.dma_semaphore, #tpu.memory_space<semaphore_mem>>
      tpu.enqueue_dma source(%46 : memref<1x128xf32, #tpu.memory_space<any>>) target(%48 : memref<1x128xf32, #tpu.memory_space<vmem>>) target_semaphore(%50 : memref<!tpu.dma_semaphore, #tpu.memory_space<semaphore_mem>>)
      %c3_i32 = arith.constant 3 : i32
      %51 = arith.addi %26, %c3_i32 : i32
      %52 = arith.index_cast %51 : i32 to index
      %53 = memref.load %arg2[%52] : memref<16xi32, #tpu.memory_space<smem>>
      %c0_i32_28 = arith.constant 0 : i32
      %54 = tpu.memref_slice %arg3[%53, %c0_i32_28] : memref<512x128xf32, #tpu.memory_space<any>> -> memref<1x128xf32, #tpu.memory_space<any>>
      %c3_i32_29 = arith.constant 3 : i32
      %c0_i32_30 = arith.constant 0 : i32
      %55 = tpu.memref_slice %arg6[%1, %c3_i32_29, %c0_i32_30] : memref<2x8x128xf32, #tpu.memory_space<vmem>> -> memref<1x1x128xf32, #tpu.memory_space<vmem>>
      %56 = tpu.memref_squeeze %55 : memref<1x1x128xf32, #tpu.memory_space<vmem>> -> memref<1x128xf32, #tpu.memory_space<vmem>>
      %57 = tpu.memref_slice %arg7[%1] : memref<2x!tpu.dma_semaphore, #tpu.memory_space<semaphore_mem>> -> memref<1x!tpu.dma_semaphore, #tpu.memory_space<semaphore_mem>>
      %58 = tpu.memref_squeeze %57 : memref<1x!tpu.dma_semaphore, #tpu.memory_space<semaphore_mem>> -> memref<!tpu.dma_semaphore, #tpu.memory_space<semaphore_mem>>
      tpu.enqueue_dma source(%54 : memref<1x128xf32, #tpu.memory_space<any>>) target(%56 : memref<1x128xf32, #tpu.memory_space<vmem>>) target_semaphore(%58 : memref<!tpu.dma_semaphore, #tpu.memory_space<semaphore_mem>>)
      %c4_i32 = arith.constant 4 : i32
      %59 = arith.addi %26, %c4_i32 : i32
      %60 = arith.index_cast %59 : i32 to index
      %61 = memref.load %arg2[%60] : memref<16xi32, #tpu.memory_space<smem>>
      %c0_i32_31 = arith.constant 0 : i32
      %62 = tpu.memref_slice %arg3[%61, %c0_i32_31] : memref<512x128xf32, #tpu.memory_space<any>> -> memref<1x128xf32, #tpu.memory_space<any>>
      %c4_i32_32 = arith.constant 4 : i32
      %c0_i32_33 = arith.constant 0 : i32
      %63 = tpu.memref_slice %arg6[%1, %c4_i32_32, %c0_i32_33] : memref<2x8x128xf32, #tpu.memory_space<vmem>> -> memref<1x1x128xf32, #tpu.memory_space<vmem>>
      %64 = tpu.memref_squeeze %63 : memref<1x1x128xf32, #tpu.memory_space<vmem>> -> memref<1x128xf32, #tpu.memory_space<vmem>>
      %65 = tpu.memref_slice %arg7[%1] : memref<2x!tpu.dma_semaphore, #tpu.memory_space<semaphore_mem>> -> memref<1x!tpu.dma_semaphore, #tpu.memory_space<semaphore_mem>>
      %66 = tpu.memref_squeeze %65 : memref<1x!tpu.dma_semaphore, #tpu.memory_space<semaphore_mem>> -> memref<!tpu.dma_semaphore, #tpu.memory_space<semaphore_mem>>
      tpu.enqueue_dma source(%62 : memref<1x128xf32, #tpu.memory_space<any>>) target(%64 : memref<1x128xf32, #tpu.memory_space<vmem>>) target_semaphore(%66 : memref<!tpu.dma_semaphore, #tpu.memory_space<semaphore_mem>>)
      %c5_i32 = arith.constant 5 : i32
      %67 = arith.addi %26, %c5_i32 : i32
      %68 = arith.index_cast %67 : i32 to index
      %69 = memref.load %arg2[%68] : memref<16xi32, #tpu.memory_space<smem>>
      %c0_i32_34 = arith.constant 0 : i32
      %70 = tpu.memref_slice %arg3[%69, %c0_i32_34] : memref<512x128xf32, #tpu.memory_space<any>> -> memref<1x128xf32, #tpu.memory_space<any>>
      %c5_i32_35 = arith.constant 5 : i32
      %c0_i32_36 = arith.constant 0 : i32
      %71 = tpu.memref_slice %arg6[%1, %c5_i32_35, %c0_i32_36] : memref<2x8x128xf32, #tpu.memory_space<vmem>> -> memref<1x1x128xf32, #tpu.memory_space<vmem>>
      %72 = tpu.memref_squeeze %71 : memref<1x1x128xf32, #tpu.memory_space<vmem>> -> memref<1x128xf32, #tpu.memory_space<vmem>>
      %73 = tpu.memref_slice %arg7[%1] : memref<2x!tpu.dma_semaphore, #tpu.memory_space<semaphore_mem>> -> memref<1x!tpu.dma_semaphore, #tpu.memory_space<semaphore_mem>>
      %74 = tpu.memref_squeeze %73 : memref<1x!tpu.dma_semaphore, #tpu.memory_space<semaphore_mem>> -> memref<!tpu.dma_semaphore, #tpu.memory_space<semaphore_mem>>
      tpu.enqueue_dma source(%70 : memref<1x128xf32, #tpu.memory_space<any>>) target(%72 : memref<1x128xf32, #tpu.memory_space<vmem>>) target_semaphore(%74 : memref<!tpu.dma_semaphore, #tpu.memory_space<semaphore_mem>>)
      %c6_i32 = arith.constant 6 : i32
      %75 = arith.addi %26, %c6_i32 : i32
      %76 = arith.index_cast %75 : i32 to index
      %77 = memref.load %arg2[%76] : memref<16xi32, #tpu.memory_space<smem>>
      %c0_i32_37 = arith.constant 0 : i32
      %78 = tpu.memref_slice %arg3[%77, %c0_i32_37] : memref<512x128xf32, #tpu.memory_space<any>> -> memref<1x128xf32, #tpu.memory_space<any>>
      %c6_i32_38 = arith.constant 6 : i32
      %c0_i32_39 = arith.constant 0 : i32
      %79 = tpu.memref_slice %arg6[%1, %c6_i32_38, %c0_i32_39] : memref<2x8x128xf32, #tpu.memory_space<vmem>> -> memref<1x1x128xf32, #tpu.memory_space<vmem>>
      %80 = tpu.memref_squeeze %79 : memref<1x1x128xf32, #tpu.memory_space<vmem>> -> memref<1x128xf32, #tpu.memory_space<vmem>>
      %81 = tpu.memref_slice %arg7[%1] : memref<2x!tpu.dma_semaphore, #tpu.memory_space<semaphore_mem>> -> memref<1x!tpu.dma_semaphore, #tpu.memory_space<semaphore_mem>>
      %82 = tpu.memref_squeeze %81 : memref<1x!tpu.dma_semaphore, #tpu.memory_space<semaphore_mem>> -> memref<!tpu.dma_semaphore, #tpu.memory_space<semaphore_mem>>
      tpu.enqueue_dma source(%78 : memref<1x128xf32, #tpu.memory_space<any>>) target(%80 : memref<1x128xf32, #tpu.memory_space<vmem>>) target_semaphore(%82 : memref<!tpu.dma_semaphore, #tpu.memory_space<semaphore_mem>>)
      %c7_i32 = arith.constant 7 : i32
      %83 = arith.addi %26, %c7_i32 : i32
      %84 = arith.index_cast %83 : i32 to index
      %85 = memref.load %arg2[%84] : memref<16xi32, #tpu.memory_space<smem>>
      %c0_i32_40 = arith.constant 0 : i32
      %86 = tpu.memref_slice %arg3[%85, %c0_i32_40] : memref<512x128xf32, #tpu.memory_space<any>> -> memref<1x128xf32, #tpu.memory_space<any>>
      %c7_i32_41 = arith.constant 7 : i32
      %c0_i32_42 = arith.constant 0 : i32
      %87 = tpu.memref_slice %arg6[%1, %c7_i32_41, %c0_i32_42] : memref<2x8x128xf32, #tpu.memory_space<vmem>> -> memref<1x1x128xf32, #tpu.memory_space<vmem>>
      %88 = tpu.memref_squeeze %87 : memref<1x1x128xf32, #tpu.memory_space<vmem>> -> memref<1x128xf32, #tpu.memory_space<vmem>>
      %89 = tpu.memref_slice %arg7[%1] : memref<2x!tpu.dma_semaphore, #tpu.memory_space<semaphore_mem>> -> memref<1x!tpu.dma_semaphore, #tpu.memory_space<semaphore_mem>>
      %90 = tpu.memref_squeeze %89 : memref<1x!tpu.dma_semaphore, #tpu.memory_space<semaphore_mem>> -> memref<!tpu.dma_semaphore, #tpu.memory_space<semaphore_mem>>
      tpu.enqueue_dma source(%86 : memref<1x128xf32, #tpu.memory_space<any>>) target(%88 : memref<1x128xf32, #tpu.memory_space<vmem>>) target_semaphore(%90 : memref<!tpu.dma_semaphore, #tpu.memory_space<semaphore_mem>>)
    } else {
    }
    %c0_i32_4 = arith.constant 0 : i32
    %c0_i32_5 = arith.constant 0 : i32
    %9 = tpu.memref_slice %arg6[%0, %c0_i32_4, %c0_i32_5] : memref<2x8x128xf32, #tpu.memory_space<vmem>> -> memref<1x8x128xf32, #tpu.memory_space<vmem>>
    %10 = tpu.memref_squeeze %9 : memref<1x8x128xf32, #tpu.memory_space<vmem>> -> memref<8x128xf32, #tpu.memory_space<vmem>>
    %c0_i32_6 = arith.constant 0 : i32
    %c0_i32_7 = arith.constant 0 : i32
    %11 = tpu.memref_slice %arg6[%0, %c0_i32_6, %c0_i32_7] : memref<2x8x128xf32, #tpu.memory_space<vmem>> -> memref<1x8x128xf32, #tpu.memory_space<vmem>>
    %12 = tpu.memref_squeeze %11 : memref<1x8x128xf32, #tpu.memory_space<vmem>> -> memref<8x128xf32, #tpu.memory_space<vmem>>
    %13 = tpu.memref_slice %arg7[%0] : memref<2x!tpu.dma_semaphore, #tpu.memory_space<semaphore_mem>> -> memref<1x!tpu.dma_semaphore, #tpu.memory_space<semaphore_mem>>
    %14 = tpu.memref_squeeze %13 : memref<1x!tpu.dma_semaphore, #tpu.memory_space<semaphore_mem>> -> memref<!tpu.dma_semaphore, #tpu.memory_space<semaphore_mem>>
    tpu.wait_dma2 semaphore(%14 : memref<!tpu.dma_semaphore, #tpu.memory_space<semaphore_mem>>) src(%10 : memref<8x128xf32, #tpu.memory_space<vmem>>) dst(%12 : memref<8x128xf32, #tpu.memory_space<vmem>>)
    %15 = arith.index_cast %0 : i32 to index
    %c0 = arith.constant 0 : index
    %c0_8 = arith.constant 0 : index
    %16 = vector.load %arg6[%15, %c0, %c0_8] : memref<2x8x128xf32, #tpu.memory_space<vmem>>, vector<1x8x128xf32>
    %17 = vector.shape_cast %16 : vector<1x8x128xf32> to vector<8x128xf32>
    %c0_9 = arith.constant 0 : index
    %c0_10 = arith.constant 0 : index
    %18 = vector.load %arg4[%c0_9, %c0_10] : memref<8x128xf32, #tpu.memory_space<vmem>>, vector<8x128xf32>
    %19 = arith.addf %17, %18 : vector<8x128xf32>
    %c0_11 = arith.constant 0 : index
    %c0_12 = arith.constant 0 : index
    %c0_13 = arith.constant 0 : index
    %20 = vector.load %arg5[%c0_11, %c0_12, %c0_13] : memref<1x8x128xf32, #tpu.memory_space<vmem>>, vector<1x8x128xf32>
    %21 = vector.shape_cast %20 : vector<1x8x128xf32> to vector<8x128xf32>
    %22 = vector.shape_cast %19 : vector<8x128xf32> to vector<1x8x128xf32>
    tpu.vector_store %arg5[%c0_11, %c0_12, %c0_13], %22 {strides = array<i32>} : memref<1x8x128xf32, #tpu.memory_space<vmem>>, vector<1x8x128xf32>,
    return
  }
  func.func @transform_1(%arg0: i32, %arg1: i32, %arg2: memref<16xi32, #tpu.memory_space<smem>>) -> (i32, i32) {
    %c0_i32 = arith.constant 0 : i32
    %c0_i32_0 = arith.constant 0 : i32
    return %arg0, %c0_i32 : i32, i32
  }
  func.func @transform_2(%arg0: i32, %arg1: i32, %arg2: memref<16xi32, #tpu.memory_space<smem>>) -> (i32, i32, i32) {
    %c0_i32 = arith.constant 0 : i32
    %c0_i32_0 = arith.constant 0 : i32
    return %arg1, %arg0, %c0_i32 : i32, i32, i32
  }
}

</mosaic_0001>

<llo_original>
// kernel: tpu_custom_call.1
$region0: #{tpu_custom_call.1}
  #allocation0 [shape = 'u32[]', space=smem, size = 0x4, offset = 0x4, fixed_abs, tag = 'smem constant byte address 0x4 - core index']
  #allocation1 [shape = 'u32[144,128]{1,0:T(1,128)}', space=vmem, size = 0x12000, scoped, tag = 'internal scratch']
  #allocation2 [shape = 'f32[2,8,128]{2,1,0:T(8,128)}', space=vmem, size = 0x2000, scoped, tag = 'scratch operand']
  #allocation3 [shape = 's32[2]{0}', space=sflag, size = 0x8, scoped, tag = 'scratch operand']
  #allocation4 [shape = 's32[1]{0}', space=sflag, size = 0x4, scoped, tag = 'scoped memory for tpu_custom_call.1']
  #allocation5 [shape = 'u8[512]{0}', space=smem, size = 0x200, scoped, tag = 'prefetched SMEM operand 0']
  #allocation10 [shape = 's32[]', space=sflag, size = 0x4, offset = 0, fixed_abs, tag = 'sflag constant byte address 0x0 - dummy sync flag']
  #allocation11 [shape = 's32[]', space=sflag, size = 0x4, offset = 0, fixed_abs, tag = 'sflag constant byte address 0x0 - dummy sync flag']
  #allocation12 [shape = 'u32[]', space=smem, size = 0x4, offset = 0x44, fixed_abs, tag = 'smem constant byte address 0x44 - assertion arg 0']
  #allocation13 [shape = 'u32[]', space=smem, size = 0x4, offset = 0x48, fixed_abs, tag = 'smem constant byte address 0x48 - assertion arg 1']
  #allocation14 [shape = 's32[]', space=sflag, size = 0x4, offset = 0, fixed_abs, tag = 'sflag constant byte address 0x0 - dummy sync flag']
  #allocation15 [shape = 's32[]', space=sflag, size = 0x4, offset = 0, fixed_abs, tag = 'sflag constant byte address 0x0 - dummy sync flag']
  #allocation16 [shape = 's32[]', space=sflag, size = 0x4, offset = 0, fixed_abs, tag = 'sflag constant byte address 0x0 - dummy sync flag']
  #allocation17 [shape = 's32[]', space=sflag, size = 0x4, offset = 0, fixed_abs, tag = 'sflag constant byte address 0x0 - dummy sync flag']
  #allocation18 [shape = 's32[]', space=sflag, size = 0x4, offset = 0, fixed_abs, tag = 'sflag constant byte address 0x0 - dummy sync flag']
  #allocation19 [shape = 's32[]', space=sflag, size = 0x4, offset = 0, fixed_abs, tag = 'sflag constant byte address 0x0 - dummy sync flag']
  #allocation20 [shape = 's32[]', space=sflag, size = 0x4, offset = 0, fixed_abs, tag = 'sflag constant byte address 0x0 - dummy sync flag']
  #allocation21 [shape = 's32[]', space=sflag, size = 0x4, offset = 0, fixed_abs, tag = 'sflag constant byte address 0x0 - dummy sync flag']
  #allocation22 [shape = 's32[]', space=sflag, size = 0x4, offset = 0, fixed_abs, tag = 'sflag constant byte address 0x0 - dummy sync flag']
  #allocation23 [shape = 's32[]', space=sflag, size = 0x4, offset = 0, fixed_abs, tag = 'sflag constant byte address 0x0 - dummy sync flag']
  #allocation24 [shape = 's32[]', space=sflag, size = 0x4, offset = 0, fixed_abs, tag = 'sflag constant byte address 0x0 - dummy sync flag']
  #allocation25 [shape = 's32[]', space=sflag, size = 0x4, offset = 0, fixed_abs, tag = 'sflag constant byte address 0x0 - dummy sync flag']
  #allocation26 [shape = 's32[]', space=sflag, size = 0x4, offset = 0, fixed_abs, tag = 'sflag constant byte address 0x0 - dummy sync flag']
  #allocation27 [shape = 's32[]', space=sflag, size = 0x4, offset = 0, fixed_abs, tag = 'sflag constant byte address 0x0 - dummy sync flag']
  #allocation28 [shape = 's32[]', space=sflag, size = 0x4, offset = 0, fixed_abs, tag = 'sflag constant byte address 0x0 - dummy sync flag']
  #allocation29 [shape = 's32[]', space=sflag, size = 0x4, offset = 0, fixed_abs, tag = 'sflag constant byte address 0x0 - dummy sync flag']
  #allocation30 [shape = 's32[]', space=sflag, size = 0x4, offset = 0, fixed_abs, tag = 'sflag constant byte address 0x0 - dummy sync flag']
  #allocation31 [shape = 's32[]', space=sflag, size = 0x4, offset = 0, fixed_abs, tag = 'sflag constant byte address 0x0 - dummy sync flag']
  #allocation32 [shape = 's32[]', space=sflag, size = 0x4, offset = 0, fixed_abs, tag = 'sflag constant byte address 0x0 - dummy sync flag']
  #allocation33 [shape = 's32[]', space=sflag, size = 0x4, offset = 0, fixed_abs, tag = 'sflag constant byte address 0x0 - dummy sync flag']
  #allocation34 [shape = 's32[]', space=sflag, size = 0x4, offset = 0, fixed_abs, tag = 'sflag constant byte address 0x0 - dummy sync flag']
  #allocation35 [shape = 's32[]', space=sflag, size = 0x4, offset = 0, fixed_abs, tag = 'sflag constant byte address 0x0 - dummy sync flag']
  #allocation36 [shape = 's32[]', space=sflag, size = 0x4, offset = 0, fixed_abs, tag = 'sflag constant byte address 0x0 - dummy sync flag']
  #allocation37 [shape = 's32[]', space=sflag, size = 0x4, offset = 0, fixed_abs, tag = 'sflag constant byte address 0x0 - dummy sync flag']
  #allocation38 [shape = 's32[]', space=sflag, size = 0x4, offset = 0, fixed_abs, tag = 'sflag constant byte address 0x0 - dummy sync flag']
  #allocation39 [shape = 's32[]', space=sflag, size = 0x4, offset = 0, fixed_abs, tag = 'sflag constant byte address 0x0 - dummy sync flag']
  #allocation40 [shape = 's32[]', space=sflag, size = 0x4, offset = 0, fixed_abs, tag = 'sflag constant byte address 0x0 - dummy sync flag']
  #allocation41 [shape = 's32[]', space=sflag, size = 0x4, offset = 0, fixed_abs, tag = 'sflag constant byte address 0x0 - dummy sync flag']
  #allocation42 [shape = 's32[]', space=sflag, size = 0x4, offset = 0, fixed_abs, tag = 'sflag constant byte address 0x0 - dummy sync flag']
  #allocation43 [shape = 's32[]', space=sflag, size = 0x4, offset = 0, fixed_abs, tag = 'sflag constant byte address 0x0 - dummy sync flag']
  %s0 = inlined_call_operand.hbm [shape: s32[16], index: 0, kind: input, shape index: {}]
  %s1 = inlined_call_operand.hbm [shape: f32[512,128], index: 1, kind: input, shape index: {}]
  %s2 = inlined_call_operand.hbm [shape: f32[8,128], index: 2, kind: input, shape index: {}]
  %s3 = inlined_call_operand.hbm [shape: f32[2,8,128], index: 3, kind: output, shape index: {}]
  %s4 = sld [smem:[#allocation0]]
  $region113: #{tpu_custom_call.1} parent=0
    _
  %s6 = ssub.s32 1, %s4
  %s7 = scalar_select 0, %s6, %s4
  %9 = dma.hbm_to_smem %s0, 16, [#allocation5], [#allocation4]
  %10 = dma.done [#allocation4], 16
  %11 = sfence
  $region1: #{tpu_custom_call.1} parent=0
    #allocation6 [shape = 'u8[4096]{0}', space=vmem, size = 0x1000, scoped, tag = 'input window, operand 2, single buffered']
    #allocation7 [shape = 's32[2]{0}', space=sflag, size = 0x8, scoped, tag = 'scoped memory for tpu_custom_call.1']
    #allocation8 [shape = 's32[2]{0}', space=sflag, size = 0x8, scoped, tag = 'scoped memory for tpu_custom_call.1']
    #allocation9 [shape = 'u8[8192]{0}', space=vmem, size = 0x2000, scoped, tag = 'output window, operand 0']
    %12 = vsyncpa [#allocation7], 0
    %13 = vsyncpa [#allocation8], 0
    %s14 = scalar_lea.sflag [#allocation8], 1
    %15 = vsyncpa %s14, 0
    loop: start=0, step=1, limit=4
    $region2: #{tpu_custom_call.1} parent=1 // loop_pre_header
      _
    $region3: #{tpu_custom_call.1} parent=1 // loop_header
      %s17 = sphi 0, %s21
      %p18 = scmp.ge.s32.totalorder %s17, 4
      %s24 = sphi 0, %s36
      %s25 = sphi 0, %s32
      %s26 = sphi 0, %s24
      %s27 = sphi 0, %s25
      %s28 = sphi 0, %s26
      %s29 = sphi 0, %s27
      %s39 = sphi 0, %s41
      %s42 = sphi 0, %s39
      %s43 = sphi 0, %s42
      %s59 = sphi 0, %s43
      %s67 = sphi 0, %s69
      %s70 = sphi 0, %s67
      %s71 = sphi 0, %s70
      %s87 = sphi 0, %s71
    $region4: #{tpu_custom_call.1} parent=1 // loop_header_branch
      %20 = sbr.rel (%p18) target = $region8
    $region5: #{tpu_custom_call.1} parent=1 // loop_body
      %s22 = ssub.s32 %s17, 1
      %s23 = ssub.s32 %s17, 2
      %s30 = sadd.s32 1, %s25
      %p31 = scmp.ge.s32.totalorder %s30, 2
      %s32 = scalar_select %p31, 0, %s30
      %s33 = sadd.s32 1, %s24
      %s34 = scalar_select %p31, %s33, %s24
      %p35 = scmp.ge.s32.totalorder %s34, 1
      %s36 = scalar_select %p35, 0, %s34
      %s37 = ssub.s32 %s24, %s36
      %p38 = scmp.eq.s32.totalorder %s37, 0
      %s40 = sadd.s32 %s39, 1
      %s41 = scalar_select %p38, %s39, %s40
      %p44 = pneg %p38
      %p45 = scmp.eq.s32.totalorder %s17, 1
      %p46 = por %p44, %p45
      %p47 = scmp.ne.s32.totalorder %s39, %s42
      %p48 = scmp.eq.s32.totalorder %s17, 0
      %p49 = por %p47, %p48
      %p50 = scmp.ne.s32.totalorder %s39, %s42
      %p51 = scmp.eq.s32.totalorder %s22, 1
      %p52 = por %p50, %p51
      %p53 = scmp.ne.s32.totalorder %s42, %s43
      %p54 = scmp.eq.s32.totalorder %s22, 0
      %p55 = por %p53, %p54
      %p56 = scmp.ne.s32.totalorder %s42, %s43
      %p57 = scmp.eq.s32.totalorder %s23, 1
      %p58 = por %p56, %p57
      %p60 = scmp.ne.s32.totalorder %s43, %s59
      %p61 = scmp.eq.s32.totalorder %s23, 0
      %p62 = por %p60, %p61
      %s63 = ssub.s32 %s25, %s32
      %s64 = ssub.s32 %s24, %s36
      %s65 = sor.u32 %s63, %s64
      %p66 = scmp.eq.s32.totalorder %s65, 0
      %s68 = sadd.s32 %s67, 1
      %s69 = scalar_select %p66, %s67, %s68
      %p72 = pneg %p66
      %p73 = scmp.eq.s32.totalorder %s17, 1
      %p74 = por %p72, %p73
      %p75 = scmp.ne.s32.totalorder %s67, %s70
      %p76 = scmp.eq.s32.totalorder %s17, 0
      %p77 = por %p75, %p76
      %p78 = scmp.ne.s32.totalorder %s67, %s70
      %p79 = scmp.eq.s32.totalorder %s22, 1
      %p80 = por %p78, %p79
      %p81 = scmp.ne.s32.totalorder %s70, %s71
      %p82 = scmp.eq.s32.totalorder %s22, 0
      %p83 = por %p81, %p82
      %p84 = scmp.ne.s32.totalorder %s70, %s71
      %p85 = scmp.eq.s32.totalorder %s23, 1
      %p86 = por %p84, %p85
      %p88 = scmp.ne.s32.totalorder %s71, %s87
      %p89 = scmp.eq.s32.totalorder %s23, 0
      %p90 = por %p88, %p89
      %p91 = scmp.le.s32.totalorder 1, %s17
      %p92 = scmp.lt.s32.totalorder %s17, 3
      %p93 = pnand %p91, %p92
      %p94 = pneg %p93
      // Predicated region
      $region9: #{tpu_custom_call.1} parent=5 // pred_check
        _
      $region10: #{tpu_custom_call.1} parent=5 // pred_check_branch
        %96 = sbr.rel (%p93) target = $region12
      $region11: #{tpu_custom_call.1} parent=5 // pred_region
        %s97 = ssub.s32 %s17, 1
        // Predicated region
        $region13: #{tpu_custom_call.1} parent=11 // pred_check
          %p98 = pneg %p55
        $region14: #{tpu_custom_call.1} parent=11 // pred_check_branch
          %100 = sbr.rel (%p98) target = $region16
        $region15: #{tpu_custom_call.1} parent=11 // pred_region
          %s102 = ssub.s32 128, 128
          %103 = vsyncadd [#allocation7], %s102
          %s104 = smul.addr %s26, 128
          %s105 = scalar_lea.hbm %s2, %s104
          %s107 = sshll.u32 [#allocation6], 4
          %s108 = int_to_ptr.vmem [resolvable:$true] %s107
          %110 = dma.hbm_to_vmem [thread:$0]  %s105, 128, %s108, [#allocation7]
        $region16: #{tpu_custom_call.1} parent=11 // pred_fallthru
          _
      $region12: #{tpu_custom_call.1} parent=5 // pred_fallthru
        _
      %p111 = scmp.lt.s32.totalorder %s17, 2
      // Predicated region
      $region17: #{tpu_custom_call.1} parent=5 // pred_check
        %p112 = pneg %p111
      $region18: #{tpu_custom_call.1} parent=5 // pred_check_branch
        %114 = sbr.rel (%p112) target = $region20
      $region19: #{tpu_custom_call.1} parent=5 // pred_region
        _
      $region20: #{tpu_custom_call.1} parent=5 // pred_fallthru
        _
      %p115 = scmp.le.s32.totalorder 1, %s17
      %p116 = scmp.lt.s32.totalorder %s17, 3
      %p117 = pnand %p115, %p116
      %p118 = pneg %p117
      // Predicated region
      $region21: #{tpu_custom_call.1} parent=5 // pred_check
        _
      $region22: #{tpu_custom_call.1} parent=5 // pred_check_branch
        %120 = sbr.rel (%p117) target = $region24
      $region23: #{tpu_custom_call.1} parent=5 // pred_region
        %s121 = ssub.s32 %s17, 1
        // Predicated region
        $region25: #{tpu_custom_call.1} parent=23 // pred_check
          %p122 = pneg %p55
        $region26: #{tpu_custom_call.1} parent=23 // pred_check_branch
          %124 = sbr.rel (%p122) target = $region28
        $region27: #{tpu_custom_call.1} parent=23 // pred_region
          %125 = dma.done [#allocation7], 128
        $region28: #{tpu_custom_call.1} parent=23 // pred_fallthru
          _
        %p126 = pneg %p55
        %p127 = pneg %p52
        %p128 = pneg %p83
        %p129 = pneg %p80
        %s130 = sand.u32 %s70, 1
        %s131 = scalar_lea.sflag [#allocation8], %s130
        %s132 = sand.u32 %s70, 1
        %s133 = smul.addr %s132, 8
        %s134 = scalar_lea.vmem [#allocation9], %s133
        %s135 = sand.u32 %s27, 1
        %s136 = ssub.s32 1, %s135
        %p137 = scmp.eq.s32.totalorder %s27, 0
        // Predicated region
        $region29: #{tpu_custom_call.1} parent=23 // pred_check
          %p138 = pneg %p137
        $region30: #{tpu_custom_call.1} parent=23 // pred_check_branch
          %140 = sbr.rel (%p138) target = $region32
        $region31: #{tpu_custom_call.1} parent=23 // pred_region
          %s141 = smul.u32 %s26, 8
          %s142 = sld [smem:[#allocation5 + %s141]]
          %s143 = smul.addr %s142, 16
          %s144 = scalar_lea.hbm %s1, %s143
          // Predicated region
          $region33: #{tpu_custom_call.1} parent=31 // pred_check
            _
          $region34: #{tpu_custom_call.1} parent=31 // pred_check_branch
            %146 = sbr.rel target = $region36
          $region35: #{tpu_custom_call.1} parent=31 // pred_region
            %147 = sst [smem:[#allocation12]] [#allocation11]
            %148 = sst [smem:[#allocation13]] [#allocation10]
          $region36: #{tpu_custom_call.1} parent=31 // pred_fallthru
            _
          %150 = shalt.err (0)
          %s152 = sshll.u32 [#allocation2], 4
          %s153 = int_to_ptr.vmem [resolvable:$true] %s152
          %155 = dma.hbm_to_vmem [thread:$0]  %s144, 16, %s153, [#allocation3]
          %s156 = sadd.s32 %s141, 1
          %s157 = sld [smem:[#allocation5 + %s156]]
          %s158 = smul.addr %s157, 16
          %s159 = scalar_lea.hbm %s1, %s158
          %s160 = scalar_lea.vmem [#allocation2], 1
          // Predicated region
          $region37: #{tpu_custom_call.1} parent=31 // pred_check
            _
          $region38: #{tpu_custom_call.1} parent=31 // pred_check_branch
            %162 = sbr.rel target = $region40
          $region39: #{tpu_custom_call.1} parent=31 // pred_region
            %163 = sst [smem:[#allocation12]] [#allocation15]
            %164 = sst [smem:[#allocation13]] [#allocation14]
          $region40: #{tpu_custom_call.1} parent=31 // pred_fallthru
            _
          %166 = shalt.err (0)
          %s168 = sshll.u32 %s160, 4
          %s169 = int_to_ptr.vmem [resolvable:$true] %s168
          %171 = dma.hbm_to_vmem [thread:$0]  %s159, 16, %s169, [#allocation3]
          %s172 = sadd.s32 %s141, 2
          %s173 = sld [smem:[#allocation5 + %s172]]
          %s174 = smul.addr %s173, 16
          %s175 = scalar_lea.hbm %s1, %s174
          %s176 = scalar_lea.vmem [#allocation2], 2
          // Predicated region
          $region41: #{tpu_custom_call.1} parent=31 // pred_check
            _
          $region42: #{tpu_custom_call.1} parent=31 // pred_check_branch
            %178 = sbr.rel target = $region44
          $region43: #{tpu_custom_call.1} parent=31 // pred_region
            %179 = sst [smem:[#allocation12]] [#allocation17]
            %180 = sst [smem:[#allocation13]] [#allocation16]
          $region44: #{tpu_custom_call.1} parent=31 // pred_fallthru
            _
          %182 = shalt.err (0)
          %s184 = sshll.u32 %s176, 4
          %s185 = int_to_ptr.vmem [resolvable:$true] %s184
          %187 = dma.hbm_to_vmem [thread:$0]  %s175, 16, %s185, [#allocation3]
          %s188 = sadd.s32 %s141, 3
          %s189 = sld [smem:[#allocation5 + %s188]]
          %s190 = smul.addr %s189, 16
          %s191 = scalar_lea.hbm %s1, %s190
          %s192 = scalar_lea.vmem [#allocation2], 3
          // Predicated region
          $region45: #{tpu_custom_call.1} parent=31 // pred_check
            _
          $region46: #{tpu_custom_call.1} parent=31 // pred_check_branch
            %194 = sbr.rel target = $region48
          $region47: #{tpu_custom_call.1} parent=31 // pred_region
            %195 = sst [smem:[#allocation12]] [#allocation19]
            %196 = sst [smem:[#allocation13]] [#allocation18]
          $region48: #{tpu_custom_call.1} parent=31 // pred_fallthru
            _
          %198 = shalt.err (0)
          %s200 = sshll.u32 %s192, 4
          %s201 = int_to_ptr.vmem [resolvable:$true] %s200
          %203 = dma.hbm_to_vmem [thread:$0]  %s191, 16, %s201, [#allocation3]
          %s204 = sadd.s32 %s141, 4
          %s205 = sld [smem:[#allocation5 + %s204]]
          %s206 = smul.addr %s205, 16
          %s207 = scalar_lea.hbm %s1, %s206
          %s208 = scalar_lea.vmem [#allocation2], 4
          // Predicated region
          $region49: #{tpu_custom_call.1} parent=31 // pred_check
            _
          $region50: #{tpu_custom_call.1} parent=31 // pred_check_branch
            %210 = sbr.rel target = $region52
          $region51: #{tpu_custom_call.1} parent=31 // pred_region
            %211 = sst [smem:[#allocation12]] [#allocation21]
            %212 = sst [smem:[#allocation13]] [#allocation20]
          $region52: #{tpu_custom_call.1} parent=31 // pred_fallthru
            _
          %214 = shalt.err (0)
          %s216 = sshll.u32 %s208, 4
          %s217 = int_to_ptr.vmem [resolvable:$true] %s216
          %219 = dma.hbm_to_vmem [thread:$0]  %s207, 16, %s217, [#allocation3]
          %s220 = sadd.s32 %s141, 5
          %s221 = sld [smem:[#allocation5 + %s220]]
          %s222 = smul.addr %s221, 16
          %s223 = scalar_lea.hbm %s1, %s222
          %s224 = scalar_lea.vmem [#allocation2], 5
          // Predicated region
          $region53: #{tpu_custom_call.1} parent=31 // pred_check
            _
          $region54: #{tpu_custom_call.1} parent=31 // pred_check_branch
            %226 = sbr.rel target = $region56
          $region55: #{tpu_custom_call.1} parent=31 // pred_region
            %227 = sst [smem:[#allocation12]] [#allocation23]
            %228 = sst [smem:[#allocation13]] [#allocation22]
          $region56: #{tpu_custom_call.1} parent=31 // pred_fallthru
            _
          %230 = shalt.err (0)
          %s232 = sshll.u32 %s224, 4
          %s233 = int_to_ptr.vmem [resolvable:$true] %s232
          %235 = dma.hbm_to_vmem [thread:$0]  %s223, 16, %s233, [#allocation3]
          %s236 = sadd.s32 %s141, 6
          %s237 = sld [smem:[#allocation5 + %s236]]
          %s238 = smul.addr %s237, 16
          %s239 = scalar_lea.hbm %s1, %s238
          %s240 = scalar_lea.vmem [#allocation2], 6
          // Predicated region
          $region57: #{tpu_custom_call.1} parent=31 // pred_check
            _
          $region58: #{tpu_custom_call.1} parent=31 // pred_check_branch
            %242 = sbr.rel target = $region60
          $region59: #{tpu_custom_call.1} parent=31 // pred_region
            %243 = sst [smem:[#allocation12]] [#allocation25]
            %244 = sst [smem:[#allocation13]] [#allocation24]
          $region60: #{tpu_custom_call.1} parent=31 // pred_fallthru
            _
          %246 = shalt.err (0)
          %s248 = sshll.u32 %s240, 4
          %s249 = int_to_ptr.vmem [resolvable:$true] %s248
          %251 = dma.hbm_to_vmem [thread:$0]  %s239, 16, %s249, [#allocation3]
          %s252 = sadd.s32 %s141, 7
          %s253 = sld [smem:[#allocation5 + %s252]]
          %s254 = smul.addr %s253, 16
          %s255 = scalar_lea.hbm %s1, %s254
          %s256 = scalar_lea.vmem [#allocation2], 7
          // Predicated region
          $region61: #{tpu_custom_call.1} parent=31 // pred_check
            _
          $region62: #{tpu_custom_call.1} parent=31 // pred_check_branch
            %258 = sbr.rel target = $region64
          $region63: #{tpu_custom_call.1} parent=31 // pred_region
            %259 = sst [smem:[#allocation12]] [#allocation27]
            %260 = sst [smem:[#allocation13]] [#allocation26]
          $region64: #{tpu_custom_call.1} parent=31 // pred_fallthru
            _
          %262 = shalt.err (0)
          %s264 = sshll.u32 %s256, 4
          %s265 = int_to_ptr.vmem [resolvable:$true] %s264
          %267 = dma.hbm_to_vmem [thread:$0]  %s255, 16, %s265, [#allocation3]
        $region32: #{tpu_custom_call.1} parent=23 // pred_fallthru
          _
        %s268 = sadd.s32 %s27, 1
        %p269 = scmp.lt.s32.totalorder %s268, 2
        // Predicated region
        $region65: #{tpu_custom_call.1} parent=23 // pred_check
          %p270 = pneg %p269
        $region66: #{tpu_custom_call.1} parent=23 // pred_check_branch
          %272 = sbr.rel (%p270) target = $region68
        $region67: #{tpu_custom_call.1} parent=23 // pred_region
          %s273 = smul.u32 %s268, 8
          %s274 = smul.u32 %s26, 8
          %s275 = sadd.s32 %s273, %s274
          %s276 = sld [smem:[#allocation5 + %s275]]
          %s277 = smul.addr %s276, 16
          %s278 = scalar_lea.hbm %s1, %s277
          %s279 = smul.u32 %s136, 8
          %s280 = scalar_lea.vmem [#allocation2], %s279
          %s281 = scalar_lea.sflag [#allocation3], %s136
          // Predicated region
          $region69: #{tpu_custom_call.1} parent=67 // pred_check
            _
          $region70: #{tpu_custom_call.1} parent=67 // pred_check_branch
            %283 = sbr.rel target = $region72
          $region71: #{tpu_custom_call.1} parent=67 // pred_region
            %284 = sst [smem:[#allocation12]] [#allocation29]
            %285 = sst [smem:[#allocation13]] [#allocation28]
          $region72: #{tpu_custom_call.1} parent=67 // pred_fallthru
            _
          %287 = shalt.err (0)
          %s289 = sshll.u32 %s280, 4
          %s290 = int_to_ptr.vmem [resolvable:$true] %s289
          %292 = dma.hbm_to_vmem [thread:$0]  %s278, 16, %s290, %s281
          %s293 = sadd.s32 %s275, 1
          %s294 = sld [smem:[#allocation5 + %s293]]
          %s295 = smul.addr %s294, 16
          %s296 = scalar_lea.hbm %s1, %s295
          %s297 = sadd.s32 1, %s279
          %s298 = scalar_lea.vmem [#allocation2], %s297
          // Predicated region
          $region73: #{tpu_custom_call.1} parent=67 // pred_check
            _
          $region74: #{tpu_custom_call.1} parent=67 // pred_check_branch
            %300 = sbr.rel target = $region76
          $region75: #{tpu_custom_call.1} parent=67 // pred_region
            %301 = sst [smem:[#allocation12]] [#allocation31]
            %302 = sst [smem:[#allocation13]] [#allocation30]
          $region76: #{tpu_custom_call.1} parent=67 // pred_fallthru
            _
          %304 = shalt.err (0)
          %s306 = sshll.u32 %s298, 4
          %s307 = int_to_ptr.vmem [resolvable:$true] %s306
          %309 = dma.hbm_to_vmem [thread:$0]  %s296, 16, %s307, %s281
          %s310 = sadd.s32 %s275, 2
          %s311 = sld [smem:[#allocation5 + %s310]]
          %s312 = smul.addr %s311, 16
          %s313 = scalar_lea.hbm %s1, %s312
          %s314 = sadd.s32 2, %s279
          %s315 = scalar_lea.vmem [#allocation2], %s314
          // Predicated region
          $region77: #{tpu_custom_call.1} parent=67 // pred_check
            _
          $region78: #{tpu_custom_call.1} parent=67 // pred_check_branch
            %317 = sbr.rel target = $region80
          $region79: #{tpu_custom_call.1} parent=67 // pred_region
            %318 = sst [smem:[#allocation12]] [#allocation33]
            %319 = sst [smem:[#allocation13]] [#allocation32]
          $region80: #{tpu_custom_call.1} parent=67 // pred_fallthru
            _
          %321 = shalt.err (0)
          %s323 = sshll.u32 %s315, 4
          %s324 = int_to_ptr.vmem [resolvable:$true] %s323
          %326 = dma.hbm_to_vmem [thread:$0]  %s313, 16, %s324, %s281
          %s327 = sadd.s32 %s275, 3
          %s328 = sld [smem:[#allocation5 + %s327]]
          %s329 = smul.addr %s328, 16
          %s330 = scalar_lea.hbm %s1, %s329
          %s331 = sadd.s32 3, %s279
          %s332 = scalar_lea.vmem [#allocation2], %s331
          // Predicated region
          $region81: #{tpu_custom_call.1} parent=67 // pred_check
            _
          $region82: #{tpu_custom_call.1} parent=67 // pred_check_branch
            %334 = sbr.rel target = $region84
          $region83: #{tpu_custom_call.1} parent=67 // pred_region
            %335 = sst [smem:[#allocation12]] [#allocation35]
            %336 = sst [smem:[#allocation13]] [#allocation34]
          $region84: #{tpu_custom_call.1} parent=67 // pred_fallthru
            _
          %338 = shalt.err (0)
          %s340 = sshll.u32 %s332, 4
          %s341 = int_to_ptr.vmem [resolvable:$true] %s340
          %343 = dma.hbm_to_vmem [thread:$0]  %s330, 16, %s341, %s281
          %s344 = sadd.s32 %s275, 4
          %s345 = sld [smem:[#allocation5 + %s344]]
          %s346 = smul.addr %s345, 16
          %s347 = scalar_lea.hbm %s1, %s346
          %s348 = sadd.s32 4, %s279
          %s349 = scalar_lea.vmem [#allocation2], %s348
          // Predicated region
          $region85: #{tpu_custom_call.1} parent=67 // pred_check
            _
          $region86: #{tpu_custom_call.1} parent=67 // pred_check_branch
            %351 = sbr.rel target = $region88
          $region87: #{tpu_custom_call.1} parent=67 // pred_region
            %352 = sst [smem:[#allocation12]] [#allocation37]
            %353 = sst [smem:[#allocation13]] [#allocation36]
          $region88: #{tpu_custom_call.1} parent=67 // pred_fallthru
            _
          %355 = shalt.err (0)
          %s357 = sshll.u32 %s349, 4
          %s358 = int_to_ptr.vmem [resolvable:$true] %s357
          %360 = dma.hbm_to_vmem [thread:$0]  %s347, 16, %s358, %s281
          %s361 = sadd.s32 %s275, 5
          %s362 = sld [smem:[#allocation5 + %s361]]
          %s363 = smul.addr %s362, 16
          %s364 = scalar_lea.hbm %s1, %s363
          %s365 = sadd.s32 5, %s279
          %s366 = scalar_lea.vmem [#allocation2], %s365
          // Predicated region
          $region89: #{tpu_custom_call.1} parent=67 // pred_check
            _
          $region90: #{tpu_custom_call.1} parent=67 // pred_check_branch
            %368 = sbr.rel target = $region92
          $region91: #{tpu_custom_call.1} parent=67 // pred_region
            %369 = sst [smem:[#allocation12]] [#allocation39]
            %370 = sst [smem:[#allocation13]] [#allocation38]
          $region92: #{tpu_custom_call.1} parent=67 // pred_fallthru
            _
          %372 = shalt.err (0)
          %s374 = sshll.u32 %s366, 4
          %s375 = int_to_ptr.vmem [resolvable:$true] %s374
          %377 = dma.hbm_to_vmem [thread:$0]  %s364, 16, %s375, %s281
          %s378 = sadd.s32 %s275, 6
          %s379 = sld [smem:[#allocation5 + %s378]]
          %s380 = smul.addr %s379, 16
          %s381 = scalar_lea.hbm %s1, %s380
          %s382 = sadd.s32 6, %s279
          %s383 = scalar_lea.vmem [#allocation2], %s382
          // Predicated region
          $region93: #{tpu_custom_call.1} parent=67 // pred_check
            _
          $region94: #{tpu_custom_call.1} parent=67 // pred_check_branch
            %385 = sbr.rel target = $region96
          $region95: #{tpu_custom_call.1} parent=67 // pred_region
            %386 = sst [smem:[#allocation12]] [#allocation41]
            %387 = sst [smem:[#allocation13]] [#allocation40]
          $region96: #{tpu_custom_call.1} parent=67 // pred_fallthru
            _
          %389 = shalt.err (0)
          %s391 = sshll.u32 %s383, 4
          %s392 = int_to_ptr.vmem [resolvable:$true] %s391
          %394 = dma.hbm_to_vmem [thread:$0]  %s381, 16, %s392, %s281
          %s395 = sadd.s32 %s275, 7
          %s396 = sld [smem:[#allocation5 + %s395]]
          %s397 = smul.addr %s396, 16
          %s398 = scalar_lea.hbm %s1, %s397
          %s399 = sadd.s32 7, %s279
          %s400 = scalar_lea.vmem [#allocation2], %s399
          // Predicated region
          $region97: #{tpu_custom_call.1} parent=67 // pred_check
            _
          $region98: #{tpu_custom_call.1} parent=67 // pred_check_branch
            %402 = sbr.rel target = $region100
          $region99: #{tpu_custom_call.1} parent=67 // pred_region
            %403 = sst [smem:[#allocation12]] [#allocation43]
            %404 = sst [smem:[#allocation13]] [#allocation42]
          $region100: #{tpu_custom_call.1} parent=67 // pred_fallthru
            _
          %406 = shalt.err (0)
          %s408 = sshll.u32 %s400, 4
          %s409 = int_to_ptr.vmem [resolvable:$true] %s408
          %411 = dma.hbm_to_vmem [thread:$0]  %s398, 16, %s409, %s281
        $region68: #{tpu_custom_call.1} parent=23 // pred_fallthru
          _
        %s412 = smul.u32 %s135, 8
        %s413 = scalar_lea.vmem [#allocation2], %s412
        %s414 = scalar_lea.sflag [#allocation3], %s135
        %s415 = smul.u32 8, 1
        %s416 = sshll.u32 %s415, 4
        %417 = dma.done %s414, %s416
        %v418 = vld [vmem:[%s413] sm:$0xff]
        %v419 = vld [vmem:[#allocation6] sm:$0xff]
        %v420 = vadd.f32 %v418, %v419
        %421 = vst [vmem:[%s134] sm:$0xff] %v420
        %s422 = sand.u32 %s70, 1
        %s423 = scalar_lea.sflag [#allocation8], %s422
        %s424 = sand.u32 %s70, 1
        %s425 = smul.addr %s424, 8
        %s426 = scalar_lea.vmem [#allocation9], %s425
        // Predicated region
        $region101: #{tpu_custom_call.1} parent=23 // pred_check
          %p427 = pneg %p80
        $region102: #{tpu_custom_call.1} parent=23 // pred_check_branch
          %429 = sbr.rel (%p427) target = $region104
        $region103: #{tpu_custom_call.1} parent=23 // pred_region
          %s431 = ssub.s32 128, 128
          %432 = vsyncadd %s423, %s431
          %s433 = sadd.s32 %s26, %s27
          %s434 = smul.addr %s433, 128
          %s435 = scalar_lea.hbm %s3, %s434
          %s437 = sshll.u32 %s426, 4
          %s438 = int_to_ptr.vmem [resolvable:$true] %s437
          %440 = dma.vmem_to_hbm [thread:$0]  %s438, 128, %s435, %s423
        $region104: #{tpu_custom_call.1} parent=23 // pred_fallthru
          _
      $region24: #{tpu_custom_call.1} parent=5 // pred_fallthru
        _
      %p441 = scmp.le.s32.totalorder 2, %s17
      // Predicated region
      $region105: #{tpu_custom_call.1} parent=5 // pred_check
        %p442 = pneg %p441
      $region106: #{tpu_custom_call.1} parent=5 // pred_check_branch
        %444 = sbr.rel (%p442) target = $region108
      $region107: #{tpu_custom_call.1} parent=5 // pred_region
        %s445 = ssub.s32 %s17, 2
        // Predicated region
        $region109: #{tpu_custom_call.1} parent=107 // pred_check
          %p446 = pneg %p86
        $region110: #{tpu_custom_call.1} parent=107 // pred_check_branch
          %448 = sbr.rel (%p446) target = $region112
        $region111: #{tpu_custom_call.1} parent=107 // pred_region
          %s449 = sand.u32 %s71, 1
          %s450 = scalar_lea.sflag [#allocation8], %s449
          %s451 = sand.u32 %s71, 1
          %s452 = smul.addr %s451, 8
          %s453 = scalar_lea.vmem [#allocation9], %s452
          %454 = dma.done %s450, 128
        $region112: #{tpu_custom_call.1} parent=107 // pred_fallthru
          _
      $region108: #{tpu_custom_call.1} parent=5 // pred_fallthru
        _
    $region6: #{tpu_custom_call.1} parent=1 // loop_footer
      %s21 = sadd.s32 1, %s17
    $region7: #{tpu_custom_call.1} parent=1 // loop_footer_branch
      %16 = sbr.rel target = $region3
    $region8: #{tpu_custom_call.1} parent=1 // loop_exit
      _
    %455 = vsyncpa [#allocation7], 1
    %s456 = scalar_lea.sflag [#allocation7], 1
    %457 = vsyncpa %s456, 1
    %458 = vsyncpa [#allocation8], 1
    %s459 = scalar_lea.sflag [#allocation8], 1
    %460 = vsyncpa %s459, 1
  %461 = vsyncmov [#allocation3]
  %s462 = vpop.sfrf %461
  %p463 = scmp.eq.s32.totalorder %s462, 0
  %p464 = pneg %p463
  %466 = shalt.err (%p464)
  %s467 = scalar_lea.sflag [#allocation3], 1
  %468 = vsyncmov %s467
  %s469 = vpop.sfrf %468
  %p470 = scmp.eq.s32.totalorder %s469, 0
  %p471 = pneg %p470
  %473 = shalt.err (%p471)

</llo_original>
